<compile_context>
chip_gen: v6e
topology: v6e:2x2x1
jax: 0.10.0
libtpu: 0.0.40
codegen_flags: <defaults>
</compile_context>

<pallas_src>
import jax
import jax.numpy as jnp
from jax.experimental import pallas as pl
from jax.experimental.pallas import tpu as pltpu


# ---------------------------------------------------------------------------
# Primary kernel: weights + bias resident in VMEM, layer loop unrolled
# in-kernel (L is static), grid is 1-D over batch tiles.
# ---------------------------------------------------------------------------
def _make_resident_kernel(num_layers):
    def kernel(x_ref, w_ref, b_ref, o_ref):
        x0 = x_ref[...]                                   # (TB, F) fp32
        xl = x0
        # Statically unrolled layer loop (equivalent to fori_loop(unroll=True)).
        for l in range(num_layers):
            xl_w = jnp.dot(xl, w_ref[l],                  # (TB,F) @ (F,F) -> MXU
                           preferred_element_type=jnp.float32)
            xl = x0 * (xl_w + b_ref[l]) + xl              # b_ref[l]: (1,F) bcast
        o_ref[...] = xl.astype(o_ref.dtype)
    return kernel


# ---------------------------------------------------------------------------
# Fallback kernel (only for very large L*F*F that does not fit VMEM):
# weights streamed one layer per grid step, x_l carried in the resident
# output block (out index_map ignores the layer axis).
# ---------------------------------------------------------------------------
def _streamed_kernel(x_ref, w_ref, b_ref, o_ref):
    layer = pl.program_id(1)
    x0 = x_ref[...]                                       # (TB, F)

    @pl.when(layer == 0)
    def _():                                              # init carry per batch tile
        o_ref[...] = x0

    xl = o_ref[...]
    xl_w = jnp.dot(xl, w_ref[...], preferred_element_type=jnp.float32)
    o_ref[...] = (x0 * (xl_w + b_ref[...]) + xl).astype(o_ref.dtype)


def _round_up(a, m):
    return -(-a // m) * m


# Conservative budget so the resident path leaves headroom even on v7x
# (64 MiB physical VMEM, 32 MiB default scoped limit).
_RESIDENT_VMEM_BUDGET = 40 * 1024 * 1024


def crossnet_forward(x, kernels_t, bias, *, max_tile=256):
    """x: (B, F) f32; kernels_t: (L, F, F) with kernels_t[l] = K_l.T;
    bias: (L, 1, F)."""
    B, F = x.shape
    L = kernels_t.shape[0]
    itemsize = 4

    # --- batch tile: big enough to fill MXU rows, sublane-aligned -----------
    TB = min(max_tile, _round_up(B, 8))
    if B >= 2 * 128:
        # Keep >= 2 batch tiles (each still >= 128 rows) so v7x's two
        # TensorCores both get work; no-op on v5e/v6e.
        TB = min(TB, _round_up(pl.cdiv(B, 2), 8))
    TB = _round_up(TB, 8)

    # --- pad batch to a multiple of TB (padded rows are zeros, sliced off) --
    Bp = _round_up(B, TB)
    if Bp != B:
        x = jnp.pad(x, ((0, Bp - B), (0, 0)))
    num_tiles = Bp // TB

    # --- VMEM budgeting (double-buffered blocks) -----------------------------
    resident_bytes = itemsize * (2 * L * F * F + 2 * L * F + 4 * TB * F)
    use_resident = resident_bytes <= _RESIDENT_VMEM_BUDGET

    if use_resident:
        needed = resident_bytes
    else:
        needed = itemsize * (2 * F * F + 2 * F + 4 * TB * F)
    vmem_limit = None
    if needed + (8 << 20) > (32 << 20):
        # Raise the scoped VMEM limit above the 32 MiB default, but stay under
        # v7x's 64 MiB physical VMEM.
        vmem_limit = min(needed + (8 << 20), 56 << 20)
    # TODO(synk): for F large enough that a single (F, F) weight slab is too
    # big, tile the output-feature (N) dimension of the matmul as well.

    if use_resident:
        out_p = pl.pallas_call(
            _make_resident_kernel(L),
            out_shape=jax.ShapeDtypeStruct((Bp, F), jnp.float32),
            grid_spec=pltpu.PrefetchScalarGridSpec(
                num_scalar_prefetch=0,
                grid=(num_tiles,),
                in_specs=[
                    pl.BlockSpec((TB, F), lambda i: (i, 0)),        # x_0 tile
                    pl.BlockSpec((L, F, F), lambda i: (0, 0, 0)),   # all weights, resident
                    pl.BlockSpec((L, 1, F), lambda i: (0, 0, 0)),   # all biases, resident
                ],
                out_specs=pl.BlockSpec((TB, F), lambda i: (i, 0)),
            ),
            compiler_params=pltpu.CompilerParams(
                dimension_semantics=("parallel",),
                vmem_limit_bytes=vmem_limit,
            ),
        )(x, kernels_t, bias)
    else:
        # Streaming fallback: one (F, F) weight per layer grid step; x_l lives
        # in the resident output block across the innermost layer axis.
        out_p = pl.pallas_call(
            _streamed_kernel,
            out_shape=jax.ShapeDtypeStruct((Bp, F), jnp.float32),
            grid_spec=pltpu.PrefetchScalarGridSpec(
                num_scalar_prefetch=0,
                grid=(num_tiles, L),                      # layer axis innermost (carry)
                in_specs=[
                    pl.BlockSpec((TB, F), lambda i, l: (i, 0)),
                    pl.BlockSpec((pl.Squeezed(), F, F), lambda i, l: (l, 0, 0)),
                    pl.BlockSpec((pl.Squeezed(), 1, F), lambda i, l: (l, 0, 0)),
                ],
                out_specs=pl.BlockSpec((TB, F), lambda i, l: (i, 0)),
            ),
            compiler_params=pltpu.CompilerParams(
                dimension_semantics=("parallel", "arbitrary"),
                vmem_limit_bytes=vmem_limit,
            ),
        )(x, kernels_t, bias)

    return out_p[:B] if Bp != B else out_p


# ---------------------------------------------------------------------------
# Pure-JAX reference (same weight layout) for numerical sanity checking.
# ---------------------------------------------------------------------------
def crossnet_ref(x, kernels_t, bias):
    x0 = x
    xl = x
    for l in range(kernels_t.shape[0]):
        xl_w = jnp.dot(xl, kernels_t[l], preferred_element_type=jnp.float32)
        xl = x0 * (xl_w + bias[l]) + xl
    return xl


# ---------------------------------------------------------------------------
# Deterministic synthetic parameters.
# NOTE: converting real PyTorch weights is a one-time host-side
#   kernels_t = stack([K_l.T for K_l in kernels]);  bias = stack([b_l.T])
# done at load time, never inside the jitted forward.  Weights may optionally
# be stored as bfloat16 (f32 accumulation is kept in-kernel); f32 here so the
# check against the f32 reference stays tight.
# ---------------------------------------------------------------------------
def init_params(key, in_features, num_layers):
    kw, kb = jax.random.split(key)
    kernels_t = (jax.random.normal(kw, (num_layers, in_features, in_features),
                                   jnp.float32) * 0.05)
    bias = (jax.random.normal(kb, (num_layers, 1, in_features),
                              jnp.float32) * 0.05)
    return kernels_t, bias


if __name__ == "__main__":
    key = jax.random.PRNGKey(0)
    kp, kx = jax.random.split(key)

    F, L = 128, 3
    kernels_t, bias = init_params(kp, F, L)

    fwd = jax.jit(crossnet_forward)

    # Config 1: small, unaligned batch (exercises the padding path).
    B1 = 50
    x1 = jax.random.normal(kx, (B1, F), jnp.float32)
    out1 = jax.block_until_ready(fwd(x1, kernels_t, bias))
    ref1 = crossnet_ref(x1, kernels_t, bias)
    assert out1.shape == (B1, F), out1.shape
    assert bool(jnp.all(jnp.isfinite(out1)))
    assert bool(jnp.allclose(out1, ref1, rtol=1e-2, atol=1e-2)), \
        float(jnp.max(jnp.abs(out1 - ref1)))

    # Config 2: larger batch -> multiple batch tiles (parallel axis spans TCs).
    B2 = 272
    x2 = jax.random.normal(jax.random.fold_in(key, 1), (B2, F), jnp.float32)
    out2 = jax.block_until_ready(fwd(x2, kernels_t, bias))
    ref2 = crossnet_ref(x2, kernels_t, bias)
    assert out2.shape == (B2, F), out2.shape
    assert bool(jnp.all(jnp.isfinite(out2)))
    assert bool(jnp.allclose(out2, ref2, rtol=1e-2, atol=1e-2)), \
        float(jnp.max(jnp.abs(out2 - ref2)))

    print("KERNEL_OK")
</pallas_src>

<mosaic_0001>
module attributes {stable_mosaic.version = 11 : i64} {
  func.func @kernel(%arg0: i32, %arg1: memref<56x128xf32, #tpu.memory_space<vmem>>, %arg2: memref<3x128x128xf32, #tpu.memory_space<vmem>>, %arg3: memref<3x1x128xf32, #tpu.memory_space<vmem>>, %arg4: memref<56x128xf32, #tpu.memory_space<vmem>>) attributes {dimension_semantics = [#tpu.dimension_semantics<parallel>], iteration_bounds = array<i64: 1>, scalar_prefetch = 0 : i64, scratch_operands = 0 : i64, tpu.core_type = #tpu.core_type<tc>, window_params = [{transform_indices = @transform_0, window_bounds = array<i64: 56, 128>}, {pipeline_mode = #tpu.pipeline_mode<synchronous>, transform_indices = @transform_1, window_bounds = array<i64: 3, 128, 128>}, {pipeline_mode = #tpu.pipeline_mode<synchronous>, transform_indices = @transform_2, window_bounds = array<i64: 3, 1, 128>}, {transform_indices = @transform_3, window_bounds = array<i64: 56, 128>}]} {
    %c0 = arith.constant 0 : index
    %c0_0 = arith.constant 0 : index
    %0 = vector.load %arg1[%c0, %c0_0] : memref<56x128xf32, #tpu.memory_space<vmem>>, vector<56x128xf32>
    %c0_1 = arith.constant 0 : index
    %c0_2 = arith.constant 0 : index
    %c0_3 = arith.constant 0 : index
    %1 = vector.load %arg2[%c0_1, %c0_2, %c0_3] : memref<3x128x128xf32, #tpu.memory_space<vmem>>, vector<1x128x128xf32>
    %2 = vector.shape_cast %1 : vector<1x128x128xf32> to vector<128x128xf32>
    %cst = arith.constant dense<0.000000e+00> : vector<56x128xf32>
    %3 = tpu.matmul %0, %2, %cst {dimension_numbers = #tpu.dot_dimension_numbers<[1], [0], [0], [1], [0, 0, 1, 1], [], []>} : vector<56x128xf32>, vector<128x128xf32>, vector<56x128xf32> -> vector<56x128xf32>
    %c0_4 = arith.constant 0 : index
    %c0_5 = arith.constant 0 : index
    %c0_6 = arith.constant 0 : index
    %4 = vector.load %arg3[%c0_4, %c0_5, %c0_6] : memref<3x1x128xf32, #tpu.memory_space<vmem>>, vector<1x1x128xf32>
    %5 = vector.shape_cast %4 : vector<1x1x128xf32> to vector<1x128xf32>
    %6 = vector.broadcast %5 : vector<1x128xf32> to vector<56x128xf32>
    %7 = arith.addf %3, %6 : vector<56x128xf32>
    %8 = arith.mulf %0, %7 : vector<56x128xf32>
    %9 = arith.addf %8, %0 : vector<56x128xf32>
    %c1 = arith.constant 1 : index
    %c0_7 = arith.constant 0 : index
    %c0_8 = arith.constant 0 : index
    %10 = vector.load %arg2[%c1, %c0_7, %c0_8] : memref<3x128x128xf32, #tpu.memory_space<vmem>>, vector<1x128x128xf32>
    %11 = vector.shape_cast %10 : vector<1x128x128xf32> to vector<128x128xf32>
    %cst_9 = arith.constant dense<0.000000e+00> : vector<56x128xf32>
    %12 = tpu.matmul %9, %11, %cst_9 {dimension_numbers = #tpu.dot_dimension_numbers<[1], [0], [0], [1], [0, 0, 1, 1], [], []>} : vector<56x128xf32>, vector<128x128xf32>, vector<56x128xf32> -> vector<56x128xf32>
    %c1_10 = arith.constant 1 : index
    %c0_11 = arith.constant 0 : index
    %c0_12 = arith.constant 0 : index
    %13 = vector.load %arg3[%c1_10, %c0_11, %c0_12] : memref<3x1x128xf32, #tpu.memory_space<vmem>>, vector<1x1x128xf32>
    %14 = vector.shape_cast %13 : vector<1x1x128xf32> to vector<1x128xf32>
    %15 = vector.broadcast %14 : vector<1x128xf32> to vector<56x128xf32>
    %16 = arith.addf %12, %15 : vector<56x128xf32>
    %17 = arith.mulf %0, %16 : vector<56x128xf32>
    %18 = arith.addf %17, %9 : vector<56x128xf32>
    %c2 = arith.constant 2 : index
    %c0_13 = arith.constant 0 : index
    %c0_14 = arith.constant 0 : index
    %19 = vector.load %arg2[%c2, %c0_13, %c0_14] : memref<3x128x128xf32, #tpu.memory_space<vmem>>, vector<1x128x128xf32>
    %20 = vector.shape_cast %19 : vector<1x128x128xf32> to vector<128x128xf32>
    %cst_15 = arith.constant dense<0.000000e+00> : vector<56x128xf32>
    %21 = tpu.matmul %18, %20, %cst_15 {dimension_numbers = #tpu.dot_dimension_numbers<[1], [0], [0], [1], [0, 0, 1, 1], [], []>} : vector<56x128xf32>, vector<128x128xf32>, vector<56x128xf32> -> vector<56x128xf32>
    %c2_16 = arith.constant 2 : index
    %c0_17 = arith.constant 0 : index
    %c0_18 = arith.constant 0 : index
    %22 = vector.load %arg3[%c2_16, %c0_17, %c0_18] : memref<3x1x128xf32, #tpu.memory_space<vmem>>, vector<1x1x128xf32>
    %23 = vector.shape_cast %22 : vector<1x1x128xf32> to vector<1x128xf32>
    %24 = vector.broadcast %23 : vector<1x128xf32> to vector<56x128xf32>
    %25 = arith.addf %21, %24 : vector<56x128xf32>
    %26 = arith.mulf %0, %25 : vector<56x128xf32>
    %27 = arith.addf %26, %18 : vector<56x128xf32>
    %c0_19 = arith.constant 0 : index
    %c0_20 = arith.constant 0 : index
    %28 = vector.load %arg4[%c0_19, %c0_20] : memref<56x128xf32, #tpu.memory_space<vmem>>, vector<56x128xf32>
    tpu.vector_store %arg4[%c0_19, %c0_20], %27 {strides = array<i32>} : memref<56x128xf32, #tpu.memory_space<vmem>>, vector<56x128xf32>,
    return
  }
  func.func @transform_0(%arg0: i32) -> (i32, i32) {
    %c0_i32 = arith.constant 0 : i32
    %c0_i32_0 = arith.constant 0 : i32
    return %arg0, %c0_i32 : i32, i32
  }
  func.func @transform_1(%arg0: i32) -> (i32, i32, i32) {
    %c0_i32 = arith.constant 0 : i32
    %c0_i32_0 = arith.constant 0 : i32
    %c0_i32_1 = arith.constant 0 : i32
    %c0_i32_2 = arith.constant 0 : i32
    return %c0_i32, %c0_i32_0, %c0_i32_1 : i32, i32, i32
  }
  func.func @transform_2(%arg0: i32) -> (i32, i32, i32) {
    %c0_i32 = arith.constant 0 : i32
    %c0_i32_0 = arith.constant 0 : i32
    %c0_i32_1 = arith.constant 0 : i32
    %c0_i32_2 = arith.constant 0 : i32
    return %c0_i32, %c0_i32_0, %c0_i32_1 : i32, i32, i32
  }
  func.func @transform_3(%arg0: i32) -> (i32, i32) {
    %c0_i32 = arith.constant 0 : i32
    %c0_i32_0 = arith.constant 0 : i32
    return %arg0, %c0_i32 : i32, i32
  }
}

</mosaic_0001>

<llo_original>
// kernel: crossnet_forward.1
$region0: #{crossnet_forward.1}
  #allocation0 [shape = 'u32[]', space=smem, size = 0x4, offset = 0x4, fixed_abs, tag = 'smem constant byte address 0x4 - core index']
  #allocation1 [shape = 'u32[144,128]{1,0:T(1,128)}', space=vmem, size = 0x12000, scoped, tag = 'internal scratch']
  %s0 = inlined_call_operand.vmem [shape: f32[56,128], index: 0, kind: input, shape index: {}]
  %s1 = inlined_call_operand.hbm [shape: f32[3,128,128], index: 1, kind: input, shape index: {}]
  %s2 = inlined_call_operand.vmem [shape: f32[3,1,128], index: 2, kind: input, shape index: {}]
  %s3 = inlined_call_operand.hbm [shape: f32[56,128], index: 3, kind: output, shape index: {}]
  %s4 = sld [smem:[#allocation0]]
  $region26: #{crossnet_forward.1} parent=0
    _
  %s6 = ssub.s32 1, %s4
  %s7 = scalar_select 0, %s6, %s4
  $region1: #{crossnet_forward.1} parent=0
    #allocation2 [shape = 'u8[196608]{0}', space=vmem, size = 0x30000, scoped, tag = 'input window, operand 1, single buffered']
    #allocation3 [shape = 's32[1]{0}', space=sflag, size = 0x4, scoped, tag = 'scoped memory for crossnet_forward.1']
    #allocation4 [shape = 's32[1]{0}', space=sflag, size = 0x4, scoped, tag = 'scoped memory for crossnet_forward.1']
    #allocation5 [shape = 'u8[28672]{0}', space=vmem, size = 0x7000, scoped, tag = 'output window, operand 0, single buffered']
    %8 = vsyncpa [#allocation3], 0
    %9 = vsyncpa [#allocation4], 0
    // Predicated region
    $region2: #{crossnet_forward.1} parent=1 // pred_check
      _
    $region3: #{crossnet_forward.1} parent=1 // pred_check_branch
      %11 = sbr.rel (0) target = $region5
    $region4: #{crossnet_forward.1} parent=1 // pred_region
      _
    $region5: #{crossnet_forward.1} parent=1 // pred_fallthru
      _
    // Predicated region
    $region6: #{crossnet_forward.1} parent=1 // pred_check
      _
    $region7: #{crossnet_forward.1} parent=1 // pred_check_branch
      %13 = sbr.rel (0) target = $region9
    $region8: #{crossnet_forward.1} parent=1 // pred_region
      %s15 = ssub.s32 6144, 6144
      %16 = vsyncadd [#allocation3], %s15
      %s17 = sshll.u32 [#allocation2], 4
      %s18 = int_to_ptr.vmem [resolvable:$true] %s17
      %23 = dma.hbm_to_vmem [thread:$0]  %s1, 6144, %s18, [#allocation3], 128, 128, 8
    $region9: #{crossnet_forward.1} parent=1 // pred_fallthru
      _
    // Predicated region
    $region10: #{crossnet_forward.1} parent=1 // pred_check
      _
    $region11: #{crossnet_forward.1} parent=1 // pred_check_branch
      %25 = sbr.rel (0) target = $region13
    $region12: #{crossnet_forward.1} parent=1 // pred_region
      _
    $region13: #{crossnet_forward.1} parent=1 // pred_fallthru
      _
    // Predicated region
    $region14: #{crossnet_forward.1} parent=1 // pred_check
      _
    $region15: #{crossnet_forward.1} parent=1 // pred_check_branch
      %27 = sbr.rel (0) target = $region17
    $region16: #{crossnet_forward.1} parent=1 // pred_region
      %28 = dma.done [#allocation3], 6144
    $region17: #{crossnet_forward.1} parent=1 // pred_fallthru
      _
    %v29 = vld [vmem:[%s0] sm:$0xff]
    %v30 = vld [vmem:[%s0 + $0x8] sm:$0xff]
    %v31 = vld [vmem:[%s0 + $0x10] sm:$0xff]
    %v32 = vld [vmem:[%s0 + $0x18] sm:$0xff]
    %v33 = vld [vmem:[%s0 + $0x20] sm:$0xff]
    %v34 = vld [vmem:[%s0 + $0x28] sm:$0xff]
    %v35 = vld [vmem:[%s0 + $0x30] sm:$0xff]
    %v36 = vld [vmem:[#allocation2] sm:$0xff]
    %v37 = vld [vmem:[#allocation2 + $0x8] sm:$0xff]
    %v38 = vld [vmem:[#allocation2 + $0x10] sm:$0xff]
    %v39 = vld [vmem:[#allocation2 + $0x18] sm:$0xff]
    %v40 = vld [vmem:[#allocation2 + $0x20] sm:$0xff]
    %v41 = vld [vmem:[#allocation2 + $0x28] sm:$0xff]
    %v42 = vld [vmem:[#allocation2 + $0x30] sm:$0xff]
    %v43 = vld [vmem:[#allocation2 + $0x38] sm:$0xff]
    %v44 = vld [vmem:[#allocation2 + $0x40] sm:$0xff]
    %v45 = vld [vmem:[#allocation2 + $0x48] sm:$0xff]
    %v46 = vld [vmem:[#allocation2 + $0x50] sm:$0xff]
    %v47 = vld [vmem:[#allocation2 + $0x58] sm:$0xff]
    %v48 = vld [vmem:[#allocation2 + $0x60] sm:$0xff]
    %v49 = vld [vmem:[#allocation2 + $0x68] sm:$0xff]
    %v50 = vld [vmem:[#allocation2 + $0x70] sm:$0xff]
    %v51 = vld [vmem:[#allocation2 + $0x78] sm:$0xff]
    %v52 = vld [vmem:[%s2] sm:$0x1]
    %v54 = vlaneseq
    %v55 = vshrl.u32 %v54, 7
    %v56 = vsub.s32 0, %v55
    %v57 = vrot.slane %v52, %v56
    %59 = vmatprep.subr.mxu0 0.0
    %60 = vmatpush1.msra.mxu0 %v51
    %61 = vmatprep.subr.mxu0 0.0
    %62 = vmatpush1.msra.mxu0 %v50
    %63 = vmatprep.subr.mxu0 0.0
    %64 = vmatpush1.msra.mxu0 %v49
    %65 = vmatprep.subr.mxu0 0.0
    %66 = vmatpush1.msra.mxu0 %v48
    %67 = vmatprep.subr.mxu0 0.0
    %68 = vmatpush1.msra.mxu0 %v47
    %69 = vmatprep.subr.mxu0 0.0
    %70 = vmatpush1.msra.mxu0 %v46
    %71 = vmatprep.subr.mxu0 0.0
    %72 = vmatpush1.msra.mxu0 %v45
    %73 = vmatprep.subr.mxu0 0.0
    %74 = vmatpush1.msra.mxu0 %v44
    %75 = vmatprep.subr.mxu0 0.0
    %76 = vmatpush1.msra.mxu0 %v43
    %77 = vmatprep.subr.mxu0 0.0
    %78 = vmatpush1.msra.mxu0 %v42
    %79 = vmatprep.subr.mxu0 0.0
    %80 = vmatpush1.msra.mxu0 %v41
    %81 = vmatprep.subr.mxu0 0.0
    %82 = vmatpush1.msra.mxu0 %v40
    %83 = vmatprep.subr.mxu0 0.0
    %84 = vmatpush1.msra.mxu0 %v39
    %85 = vmatprep.subr.mxu0 0.0
    %86 = vmatpush1.msra.mxu0 %v38
    %87 = vmatprep.subr.mxu0 0.0
    %88 = vmatpush1.msra.mxu0 %v37
    %89 = vmatprep.subr.mxu0 0.0
    %90 = vmatpush1.msra.mxu0 %v36
    %91 = vmatprep.subr.mxu0 0.0
    %92 = vmatpush2.msra.mxu0 0.0
    %93 = vmatprep.subr.mxu0 0.0
    %94 = vmatpush2.msra.mxu0 0.0
    %95 = vmatprep.subr.mxu0 0.0
    %96 = vmatpush2.msra.mxu0 0.0
    %97 = vmatprep.subr.mxu0 0.0
    %98 = vmatpush2.msra.mxu0 0.0
    %99 = vmatprep.subr.mxu0 0.0
    %100 = vmatpush2.msra.mxu0 0.0
    %101 = vmatprep.subr.mxu0 0.0
    %102 = vmatpush2.msra.mxu0 0.0
    %103 = vmatprep.subr.mxu0 0.0
    %104 = vmatpush2.msra.mxu0 0.0
    %105 = vmatprep.subr.mxu0 0.0
    %106 = vmatpush2.msra.mxu0 0.0
    %107 = vmatprep.subr.mxu0 0.0
    %108 = vmatpush2.msra.mxu0 0.0
    %109 = vmatprep.subr.mxu0 0.0
    %110 = vmatpush2.msra.mxu0 0.0
    %111 = vmatprep.subr.mxu0 0.0
    %112 = vmatpush2.msra.mxu0 0.0
    %113 = vmatprep.subr.mxu0 0.0
    %114 = vmatpush2.msra.mxu0 0.0
    %115 = vmatprep.subr.mxu0 0.0
    %116 = vmatpush2.msra.mxu0 0.0
    %117 = vmatprep.subr.mxu0 0.0
    %118 = vmatpush2.msra.mxu0 0.0
    %119 = vmatprep.subr.mxu0 0.0
    %120 = vmatpush2.msra.mxu0 0.0
    %121 = vmatprep.subr.mxu0 0.0
    %122 = vmatpush2.msra.mxu0 0.0
    %123 = vmatprep.mubr.f32.mxu0 0.0
    %124 = vmatmul.mubr.f32.gmra.mxu0 %v29
    %v125 = vpop.f32.mrf.mxu0
    %v126 = vadd.f32 %v57, %v125
    %v127 = vpop.f32.mrf.mxu0
    %128 = vmatprep.mubr.f32.mxu0 0.0
    %129 = vmatmul.mubr.f32.gmra.mxu0 %v30
    %v130 = vpop.f32.mrf.mxu0
    %v131 = vadd.f32 %v57, %v130
    %v132 = vpop.f32.mrf.mxu0
    %133 = vmatprep.mubr.f32.mxu0 0.0
    %134 = vmatmul.mubr.f32.gmra.mxu0 %v31
    %v135 = vpop.f32.mrf.mxu0
    %v136 = vadd.f32 %v57, %v135
    %v137 = vpop.f32.mrf.mxu0
    %138 = vmatprep.mubr.f32.mxu0 0.0
    %139 = vmatmul.mubr.f32.gmra.mxu0 %v32
    %v140 = vpop.f32.mrf.mxu0
    %v141 = vadd.f32 %v57, %v140
    %v142 = vpop.f32.mrf.mxu0
    %143 = vmatprep.mubr.f32.mxu0 0.0
    %144 = vmatmul.mubr.f32.gmra.mxu0 %v33
    %v145 = vpop.f32.mrf.mxu0
    %v146 = vadd.f32 %v57, %v145
    %v147 = vpop.f32.mrf.mxu0
    %148 = vmatprep.mubr.f32.mxu0 0.0
    %149 = vmatmul.mubr.f32.gmra.mxu0 %v34
    %v150 = vpop.f32.mrf.mxu0
    %v151 = vadd.f32 %v57, %v150
    %v152 = vpop.f32.mrf.mxu0
    %153 = vmatprep.mubr.f32.mxu0 0.0
    %154 = vmatmul.mubr.f32.gmra.mxu0 %v35
    %v155 = vpop.f32.mrf.mxu0
    %v156 = vadd.f32 %v57, %v155
    %v157 = vpop.f32.mrf.mxu0
    %158 = vdwg.mxu0
    %v159 = vmul.f32 %v29, %v126
    %v160 = vmul.f32 %v30, %v131
    %v161 = vmul.f32 %v31, %v136
    %v162 = vmul.f32 %v32, %v141
    %v163 = vmul.f32 %v33, %v146
    %v164 = vmul.f32 %v34, %v151
    %v165 = vmul.f32 %v35, %v156
    %v166 = vadd.f32 %v159, %v29
    %v167 = vadd.f32 %v160, %v30
    %v168 = vadd.f32 %v161, %v31
    %v169 = vadd.f32 %v162, %v32
    %v170 = vadd.f32 %v163, %v33
    %v171 = vadd.f32 %v164, %v34
    %v172 = vadd.f32 %v165, %v35
    %s173 = scalar_lea.vmem [#allocation2], 128
    %v174 = vld [vmem:[%s173] sm:$0xff]
    %v175 = vld [vmem:[%s173 + $0x8] sm:$0xff]
    %v176 = vld [vmem:[%s173 + $0x10] sm:$0xff]
    %v177 = vld [vmem:[%s173 + $0x18] sm:$0xff]
    %v178 = vld [vmem:[%s173 + $0x20] sm:$0xff]
    %v179 = vld [vmem:[%s173 + $0x28] sm:$0xff]
    %v180 = vld [vmem:[%s173 + $0x30] sm:$0xff]
    %v181 = vld [vmem:[%s173 + $0x38] sm:$0xff]
    %v182 = vld [vmem:[%s173 + $0x40] sm:$0xff]
    %v183 = vld [vmem:[%s173 + $0x48] sm:$0xff]
    %v184 = vld [vmem:[%s173 + $0x50] sm:$0xff]
    %v185 = vld [vmem:[%s173 + $0x58] sm:$0xff]
    %v186 = vld [vmem:[%s173 + $0x60] sm:$0xff]
    %v187 = vld [vmem:[%s173 + $0x68] sm:$0xff]
    %v188 = vld [vmem:[%s173 + $0x70] sm:$0xff]
    %v189 = vld [vmem:[%s173 + $0x78] sm:$0xff]
    %s190 = scalar_lea.vmem %s2, 1
    %v191 = vld [vmem:[%s190] sm:$0x1]
    %v193 = vlaneseq
    %v194 = vshrl.u32 %v193, 7
    %v195 = vsub.s32 0, %v194
    %v196 = vrot.slane %v191, %v195
    %198 = vmatprep.subr.mxu0 0.0
    %199 = vmatpush1.msra.mxu0 %v189
    %200 = vmatprep.subr.mxu0 0.0
    %201 = vmatpush1.msra.mxu0 %v188
    %202 = vmatprep.subr.mxu0 0.0
    %203 = vmatpush1.msra.mxu0 %v187
    %204 = vmatprep.subr.mxu0 0.0
    %205 = vmatpush1.msra.mxu0 %v186
    %206 = vmatprep.subr.mxu0 0.0
    %207 = vmatpush1.msra.mxu0 %v185
    %208 = vmatprep.subr.mxu0 0.0
    %209 = vmatpush1.msra.mxu0 %v184
    %210 = vmatprep.subr.mxu0 0.0
    %211 = vmatpush1.msra.mxu0 %v183
    %212 = vmatprep.subr.mxu0 0.0
    %213 = vmatpush1.msra.mxu0 %v182
    %214 = vmatprep.subr.mxu0 0.0
    %215 = vmatpush1.msra.mxu0 %v181
    %216 = vmatprep.subr.mxu0 0.0
    %217 = vmatpush1.msra.mxu0 %v180
    %218 = vmatprep.subr.mxu0 0.0
    %219 = vmatpush1.msra.mxu0 %v179
    %220 = vmatprep.subr.mxu0 0.0
    %221 = vmatpush1.msra.mxu0 %v178
    %222 = vmatprep.subr.mxu0 0.0
    %223 = vmatpush1.msra.mxu0 %v177
    %224 = vmatprep.subr.mxu0 0.0
    %225 = vmatpush1.msra.mxu0 %v176
    %226 = vmatprep.subr.mxu0 0.0
    %227 = vmatpush1.msra.mxu0 %v175
    %228 = vmatprep.subr.mxu0 0.0
    %229 = vmatpush1.msra.mxu0 %v174
    %230 = vmatprep.subr.mxu0 0.0
    %231 = vmatpush2.msra.mxu0 0.0
    %232 = vmatprep.subr.mxu0 0.0
    %233 = vmatpush2.msra.mxu0 0.0
    %234 = vmatprep.subr.mxu0 0.0
    %235 = vmatpush2.msra.mxu0 0.0
    %236 = vmatprep.subr.mxu0 0.0
    %237 = vmatpush2.msra.mxu0 0.0
    %238 = vmatprep.subr.mxu0 0.0
    %239 = vmatpush2.msra.mxu0 0.0
    %240 = vmatprep.subr.mxu0 0.0
    %241 = vmatpush2.msra.mxu0 0.0
    %242 = vmatprep.subr.mxu0 0.0
    %243 = vmatpush2.msra.mxu0 0.0
    %244 = vmatprep.subr.mxu0 0.0
    %245 = vmatpush2.msra.mxu0 0.0
    %246 = vmatprep.subr.mxu0 0.0
    %247 = vmatpush2.msra.mxu0 0.0
    %248 = vmatprep.subr.mxu0 0.0
    %249 = vmatpush2.msra.mxu0 0.0
    %250 = vmatprep.subr.mxu0 0.0
    %251 = vmatpush2.msra.mxu0 0.0
    %252 = vmatprep.subr.mxu0 0.0
    %253 = vmatpush2.msra.mxu0 0.0
    %254 = vmatprep.subr.mxu0 0.0
    %255 = vmatpush2.msra.mxu0 0.0
    %256 = vmatprep.subr.mxu0 0.0
    %257 = vmatpush2.msra.mxu0 0.0
    %258 = vmatprep.subr.mxu0 0.0
    %259 = vmatpush2.msra.mxu0 0.0
    %260 = vmatprep.subr.mxu0 0.0
    %261 = vmatpush2.msra.mxu0 0.0
    %262 = vmatprep.mubr.f32.mxu0 0.0
    %263 = vmatmul.mubr.f32.gmra.mxu0 %v166
    %v264 = vpop.f32.mrf.mxu0
    %v265 = vadd.f32 %v196, %v264
    %v266 = vpop.f32.mrf.mxu0
    %267 = vmatprep.mubr.f32.mxu0 0.0
    %268 = vmatmul.mubr.f32.gmra.mxu0 %v167
    %v269 = vpop.f32.mrf.mxu0
    %v270 = vadd.f32 %v196, %v269
    %v271 = vpop.f32.mrf.mxu0
    %272 = vmatprep.mubr.f32.mxu0 0.0
    %273 = vmatmul.mubr.f32.gmra.mxu0 %v168
    %v274 = vpop.f32.mrf.mxu0
    %v275 = vadd.f32 %v196, %v274
    %v276 = vpop.f32.mrf.mxu0
    %277 = vmatprep.mubr.f32.mxu0 0.0
    %278 = vmatmul.mubr.f32.gmra.mxu0 %v169
    %v279 = vpop.f32.mrf.mxu0
    %v280 = vadd.f32 %v196, %v279
    %v281 = vpop.f32.mrf.mxu0
    %282 = vmatprep.mubr.f32.mxu0 0.0
    %283 = vmatmul.mubr.f32.gmra.mxu0 %v170
    %v284 = vpop.f32.mrf.mxu0
    %v285 = vadd.f32 %v196, %v284
    %v286 = vpop.f32.mrf.mxu0
    %287 = vmatprep.mubr.f32.mxu0 0.0
    %288 = vmatmul.mubr.f32.gmra.mxu0 %v171
    %v289 = vpop.f32.mrf.mxu0
    %v290 = vadd.f32 %v196, %v289
    %v291 = vpop.f32.mrf.mxu0
    %292 = vmatprep.mubr.f32.mxu0 0.0
    %293 = vmatmul.mubr.f32.gmra.mxu0 %v172
    %v294 = vpop.f32.mrf.mxu0
    %v295 = vadd.f32 %v196, %v294
    %v296 = vpop.f32.mrf.mxu0
    %297 = vdwg.mxu0
    %v298 = vmul.f32 %v29, %v265
    %v299 = vmul.f32 %v30, %v270
    %v300 = vmul.f32 %v31, %v275
    %v301 = vmul.f32 %v32, %v280
    %v302 = vmul.f32 %v33, %v285
    %v303 = vmul.f32 %v34, %v290
    %v304 = vmul.f32 %v35, %v295
    %v305 = vadd.f32 %v298, %v166
    %v306 = vadd.f32 %v299, %v167
    %v307 = vadd.f32 %v300, %v168
    %v308 = vadd.f32 %v301, %v169
    %v309 = vadd.f32 %v302, %v170
    %v310 = vadd.f32 %v303, %v171
    %v311 = vadd.f32 %v304, %v172
    %s312 = scalar_lea.vmem [#allocation2], 256
    %v313 = vld [vmem:[%s312] sm:$0xff]
    %v314 = vld [vmem:[%s312 + $0x8] sm:$0xff]
    %v315 = vld [vmem:[%s312 + $0x10] sm:$0xff]
    %v316 = vld [vmem:[%s312 + $0x18] sm:$0xff]
    %v317 = vld [vmem:[%s312 + $0x20] sm:$0xff]
    %v318 = vld [vmem:[%s312 + $0x28] sm:$0xff]
    %v319 = vld [vmem:[%s312 + $0x30] sm:$0xff]
    %v320 = vld [vmem:[%s312 + $0x38] sm:$0xff]
    %v321 = vld [vmem:[%s312 + $0x40] sm:$0xff]
    %v322 = vld [vmem:[%s312 + $0x48] sm:$0xff]
    %v323 = vld [vmem:[%s312 + $0x50] sm:$0xff]
    %v324 = vld [vmem:[%s312 + $0x58] sm:$0xff]
    %v325 = vld [vmem:[%s312 + $0x60] sm:$0xff]
    %v326 = vld [vmem:[%s312 + $0x68] sm:$0xff]
    %v327 = vld [vmem:[%s312 + $0x70] sm:$0xff]
    %v328 = vld [vmem:[%s312 + $0x78] sm:$0xff]
    %s329 = scalar_lea.vmem %s2, 2
    %v330 = vld [vmem:[%s329] sm:$0x1]
    %v332 = vlaneseq
    %v333 = vshrl.u32 %v332, 7
    %v334 = vsub.s32 0, %v333
    %v335 = vrot.slane %v330, %v334
    %337 = vmatprep.subr.mxu0 0.0
    %338 = vmatpush1.msra.mxu0 %v328
    %339 = vmatprep.subr.mxu0 0.0
    %340 = vmatpush1.msra.mxu0 %v327
    %341 = vmatprep.subr.mxu0 0.0
    %342 = vmatpush1.msra.mxu0 %v326
    %343 = vmatprep.subr.mxu0 0.0
    %344 = vmatpush1.msra.mxu0 %v325
    %345 = vmatprep.subr.mxu0 0.0
    %346 = vmatpush1.msra.mxu0 %v324
    %347 = vmatprep.subr.mxu0 0.0
    %348 = vmatpush1.msra.mxu0 %v323
    %349 = vmatprep.subr.mxu0 0.0
    %350 = vmatpush1.msra.mxu0 %v322
    %351 = vmatprep.subr.mxu0 0.0
    %352 = vmatpush1.msra.mxu0 %v321
    %353 = vmatprep.subr.mxu0 0.0
    %354 = vmatpush1.msra.mxu0 %v320
    %355 = vmatprep.subr.mxu0 0.0
    %356 = vmatpush1.msra.mxu0 %v319
    %357 = vmatprep.subr.mxu0 0.0
    %358 = vmatpush1.msra.mxu0 %v318
    %359 = vmatprep.subr.mxu0 0.0
    %360 = vmatpush1.msra.mxu0 %v317
    %361 = vmatprep.subr.mxu0 0.0
    %362 = vmatpush1.msra.mxu0 %v316
    %363 = vmatprep.subr.mxu0 0.0
    %364 = vmatpush1.msra.mxu0 %v315
    %365 = vmatprep.subr.mxu0 0.0
    %366 = vmatpush1.msra.mxu0 %v314
    %367 = vmatprep.subr.mxu0 0.0
    %368 = vmatpush1.msra.mxu0 %v313
    %369 = vmatprep.subr.mxu0 0.0
    %370 = vmatpush2.msra.mxu0 0.0
    %371 = vmatprep.subr.mxu0 0.0
    %372 = vmatpush2.msra.mxu0 0.0
    %373 = vmatprep.subr.mxu0 0.0
    %374 = vmatpush2.msra.mxu0 0.0
    %375 = vmatprep.subr.mxu0 0.0
    %376 = vmatpush2.msra.mxu0 0.0
    %377 = vmatprep.subr.mxu0 0.0
    %378 = vmatpush2.msra.mxu0 0.0
    %379 = vmatprep.subr.mxu0 0.0
    %380 = vmatpush2.msra.mxu0 0.0
    %381 = vmatprep.subr.mxu0 0.0
    %382 = vmatpush2.msra.mxu0 0.0
    %383 = vmatprep.subr.mxu0 0.0
    %384 = vmatpush2.msra.mxu0 0.0
    %385 = vmatprep.subr.mxu0 0.0
    %386 = vmatpush2.msra.mxu0 0.0
    %387 = vmatprep.subr.mxu0 0.0
    %388 = vmatpush2.msra.mxu0 0.0
    %389 = vmatprep.subr.mxu0 0.0
    %390 = vmatpush2.msra.mxu0 0.0
    %391 = vmatprep.subr.mxu0 0.0
    %392 = vmatpush2.msra.mxu0 0.0
    %393 = vmatprep.subr.mxu0 0.0
    %394 = vmatpush2.msra.mxu0 0.0
    %395 = vmatprep.subr.mxu0 0.0
    %396 = vmatpush2.msra.mxu0 0.0
    %397 = vmatprep.subr.mxu0 0.0
    %398 = vmatpush2.msra.mxu0 0.0
    %399 = vmatprep.subr.mxu0 0.0
    %400 = vmatpush2.msra.mxu0 0.0
    %401 = vmatprep.mubr.f32.mxu0 0.0
    %402 = vmatmul.mubr.f32.gmra.mxu0 %v305
    %v403 = vpop.f32.mrf.mxu0
    %v404 = vadd.f32 %v335, %v403
    %v405 = vpop.f32.mrf.mxu0
    %406 = vmatprep.mubr.f32.mxu0 0.0
    %407 = vmatmul.mubr.f32.gmra.mxu0 %v306
    %v408 = vpop.f32.mrf.mxu0
    %v409 = vadd.f32 %v335, %v408
    %v410 = vpop.f32.mrf.mxu0
    %411 = vmatprep.mubr.f32.mxu0 0.0
    %412 = vmatmul.mubr.f32.gmra.mxu0 %v307
    %v413 = vpop.f32.mrf.mxu0
    %v414 = vadd.f32 %v335, %v413
    %v415 = vpop.f32.mrf.mxu0
    %416 = vmatprep.mubr.f32.mxu0 0.0
    %417 = vmatmul.mubr.f32.gmra.mxu0 %v308
    %v418 = vpop.f32.mrf.mxu0
    %v419 = vadd.f32 %v335, %v418
    %v420 = vpop.f32.mrf.mxu0
    %421 = vmatprep.mubr.f32.mxu0 0.0
    %422 = vmatmul.mubr.f32.gmra.mxu0 %v309
    %v423 = vpop.f32.mrf.mxu0
    %v424 = vadd.f32 %v335, %v423
    %v425 = vpop.f32.mrf.mxu0
    %426 = vmatprep.mubr.f32.mxu0 0.0
    %427 = vmatmul.mubr.f32.gmra.mxu0 %v310
    %v428 = vpop.f32.mrf.mxu0
    %v429 = vadd.f32 %v335, %v428
    %v430 = vpop.f32.mrf.mxu0
    %431 = vmatprep.mubr.f32.mxu0 0.0
    %432 = vmatmul.mubr.f32.gmra.mxu0 %v311
    %v433 = vpop.f32.mrf.mxu0
    %v434 = vadd.f32 %v335, %v433
    %v435 = vpop.f32.mrf.mxu0
    %436 = vdwg.mxu0
    %v437 = vmul.f32 %v29, %v404
    %v438 = vmul.f32 %v30, %v409
    %v439 = vmul.f32 %v31, %v414
    %v440 = vmul.f32 %v32, %v419
    %v441 = vmul.f32 %v33, %v424
    %v442 = vmul.f32 %v34, %v429
    %v443 = vmul.f32 %v35, %v434
    %v444 = vadd.f32 %v437, %v305
    %v445 = vadd.f32 %v438, %v306
    %v446 = vadd.f32 %v439, %v307
    %v447 = vadd.f32 %v440, %v308
    %v448 = vadd.f32 %v441, %v309
    %v449 = vadd.f32 %v442, %v310
    %v450 = vadd.f32 %v443, %v311
    %451 = vst [vmem:[#allocation5] sm:$0xff] %v444
    %452 = vst [vmem:[#allocation5 + $0x8] sm:$0xff] %v445
    %453 = vst [vmem:[#allocation5 + $0x10] sm:$0xff] %v446
    %454 = vst [vmem:[#allocation5 + $0x18] sm:$0xff] %v447
    %455 = vst [vmem:[#allocation5 + $0x20] sm:$0xff] %v448
    %456 = vst [vmem:[#allocation5 + $0x28] sm:$0xff] %v449
    %457 = vst [vmem:[#allocation5 + $0x30] sm:$0xff] %v450
    // Predicated region
    $region18: #{crossnet_forward.1} parent=1 // pred_check
      _
    $region19: #{crossnet_forward.1} parent=1 // pred_check_branch
      %459 = sbr.rel (0) target = $region21
    $region20: #{crossnet_forward.1} parent=1 // pred_region
      %s461 = ssub.s32 896, 896
      %462 = vsyncadd [#allocation4], %s461
      %s463 = sshll.u32 [#allocation5], 4
      %s464 = int_to_ptr.vmem [resolvable:$true] %s463
      %469 = dma.vmem_to_hbm [thread:$0]  %s464, 896, %s3, [#allocation4], 128, 128, 8
    $region21: #{crossnet_forward.1} parent=1 // pred_fallthru
      _
    // Predicated region
    $region22: #{crossnet_forward.1} parent=1 // pred_check
      _
    $region23: #{crossnet_forward.1} parent=1 // pred_check_branch
      %471 = sbr.rel (0) target = $region25
    $region24: #{crossnet_forward.1} parent=1 // pred_region
      %472 = dma.done [#allocation4], 896
    $region25: #{crossnet_forward.1} parent=1 // pred_fallthru
      _
    %473 = vsyncpa [#allocation3], 1
    %474 = vsyncpa [#allocation4], 1

</llo_original>
